<compile_context>
chip_gen: v7x
topology: tpu7x:2x2x1
jax: 0.10.0
libtpu: 0.0.40
codegen_flags: <defaults>
</compile_context>

<pallas_src>
import functools

import jax
import jax.numpy as jnp
from jax.experimental import pallas as pl
from jax.experimental.pallas import tpu as pltpu


def _round_up(n, m):
    return ((n + m - 1) // m) * m


def _choose_row_tile(rows, C, C_out, x_itemsize, budget_bytes=40 << 20):
    """Largest row tile (multiple of 8, <=8192) whose lane-padded, double-buffered
    working set (including in-kernel temporaries) fits a VMEM budget that is safe on
    v5e/v6e/v7x.  Also capped so the grid has >=2 steps for megacore sharding."""
    C_pad = _round_up(C, 128)            # lanes are 128-wide; (tm, C) occupies tm*C_pad
    C_out_pad = _round_up(C_out, 128)
    tm = min(8192, _round_up(rows, 8))
    while tm > 8:
        need = (2 * tm * C_pad * x_itemsize      # double-buffered input row tile
                + 2 * tm * C_out_pad * 2         # double-buffered bf16 output tile
                + 3 * tm * C_pad * 4             # f32 x, f32 h, bf16 h temporaries
                + tm * C_out_pad * 4             # f32 matmul result before cast
                + C_pad * C_out_pad * 2          # resident bf16 weight
                + 4 * (2 * C_pad + C_out_pad) * 4)   # scale / shift / bias
        if need <= budget_bytes:
            break
        tm = max(8, _round_up(tm // 2, 8))
    # v7x megacore: ensure at least 2 grid steps so both TensorCores get work.
    if rows > 8:
        tm = min(tm, max(8, _round_up(pl.cdiv(rows, 2), 8)))
    return max(8, _round_up(min(tm, _round_up(rows, 8)), 8))


def _temporal_base_kernel(x_ref, scale_ref, shift_ref, w_ref, b_ref, o_ref):
    # x_ref:     (TM, C)      row tile of flattened (B*T, C) input, native dtype
    # scale_ref: (1, C)       folded BatchNorm1d scale  = gamma / sqrt(var + eps)
    # shift_ref: (1, C)       folded BatchNorm1d shift  = beta - mean * scale
    # w_ref:     (C, C_out)   shrink 1x1-conv weight, bf16, channel-in major
    # b_ref:     (1, C_out)   shrink bias, f32
    # o_ref:     (TM, C_out)  bf16 output tile
    x = x_ref[...].astype(jnp.float32)                         # f32 VPU math (v5e-safe)
    h = jnp.maximum(x * scale_ref[...] + shift_ref[...], 0.0)  # BN (eval) + ReLU
    # Dropout: identity in eval mode.
    y = jnp.dot(h.astype(w_ref.dtype), w_ref[...],
                preferred_element_type=jnp.float32)            # 1x1 Conv1d == MXU matmul
    o_ref[...] = (y + b_ref[...]).astype(o_ref.dtype)


@functools.partial(jax.jit, static_argnames=("num_joints_out", "out_dtype"))
def temporal_model_base_forward(x, bn_gamma, bn_beta, bn_mean, bn_var,
                                shrink_w, shrink_b, *, num_joints_out,
                                out_dtype=jnp.bfloat16):
    """x: (B, T, num_joints_in, in_features) -> (B, T, num_joints_out, 3)."""
    assert x.ndim == 4
    B, T, J_in, F = x.shape
    C = J_in * F
    C_out = num_joints_out * 3
    rows = B * T

    # --- glue (plain JAX): flatten rows + fold BN stats into scale/shift ----------
    # NOTE: x keeps its native HBM dtype; no wrapper-side f32 upcast or pad pass.
    x2 = x.reshape(rows, C)
    eps = 1e-5
    scale = (bn_gamma.astype(jnp.float32)
             / jnp.sqrt(bn_var.astype(jnp.float32) + eps)).reshape(1, C)
    shift = (bn_beta.astype(jnp.float32)
             - bn_mean.astype(jnp.float32) * scale[0]).reshape(1, C)
    # PyTorch Conv1d weight is (C_out, C_in, 1); kernel wants (C_in, C_out), bf16.
    w = jnp.transpose(shrink_w[:, :, 0]).astype(jnp.bfloat16)       # (C, C_out)
    b = shrink_b.reshape(1, C_out).astype(jnp.float32)

    # Row tiling: big tiles for HBM-roofline streaming, capped for v7x 64 MiB VMEM.
    tm = _choose_row_tile(rows, C, C_out, x2.dtype.itemsize)
    grid = (pl.cdiv(rows, tm),)          # ragged last block: Pallas masks the writeback

    grid_spec = pltpu.PrefetchScalarGridSpec(
        num_scalar_prefetch=0,
        grid=grid,
        in_specs=[
            pl.BlockSpec((tm, C), lambda i: (i, 0)),
            pl.BlockSpec((1, C), lambda i: (0, 0)),
            pl.BlockSpec((1, C), lambda i: (0, 0)),
            pl.BlockSpec((C, C_out), lambda i: (0, 0)),
            pl.BlockSpec((1, C_out), lambda i: (0, 0)),
        ],
        out_specs=pl.BlockSpec((tm, C_out), lambda i: (i, 0)),
    )

    out = pl.pallas_call(
        _temporal_base_kernel,
        out_shape=jax.ShapeDtypeStruct((rows, C_out), out_dtype),
        grid_spec=grid_spec,
        compiler_params=pltpu.CompilerParams(
            dimension_semantics=("parallel",),      # v7x: 2 TCs split the row tiles
            vmem_limit_bytes=48 << 20,              # > v5e 16 MiB default, < v7x 64 MiB
        ),
    )(x2, scale, shift, w, b)

    # Equivalent of: permute(0, 2, 1).view(B, -1, num_joints_out, 3)
    return out.reshape(B, T, num_joints_out, 3)


def _reference_forward(x, bn_gamma, bn_beta, bn_mean, bn_var, shrink_w, shrink_b,
                       num_joints_out):
    """Pure-JAX reference mirroring PyTorch eval-mode semantics (bf16 matmul path)."""
    B, T, J_in, F = x.shape
    C = J_in * F
    xc = x.reshape(B, T, C).astype(jnp.float32)                     # (B, T, C)
    eps = 1e-5
    scale = bn_gamma / jnp.sqrt(bn_var + eps)
    h = (xc - bn_mean[None, None, :]) * scale[None, None, :] + bn_beta[None, None, :]
    h = jnp.maximum(h, 0.0)
    w = jnp.transpose(shrink_w[:, :, 0]).astype(jnp.bfloat16)       # (C, C_out)
    y = jnp.einsum("btc,co->bto", h.astype(jnp.bfloat16), w,
                   preferred_element_type=jnp.float32)
    y = y + shrink_b[None, None, :]
    return y.reshape(B, T, num_joints_out, 3)


if __name__ == "__main__":
    # Small shapes consistent with the module's forward contract.
    B, T = 2, 16
    num_joints_in, in_features = 4, 2
    num_joints_out = 4
    channels = num_joints_in * in_features          # see TODO(synk) above
    C_out = num_joints_out * 3

    key = jax.random.PRNGKey(0)
    k = jax.random.split(key, 7)
    x = jax.random.normal(k[0], (B, T, num_joints_in, in_features), jnp.float32)
    bn_gamma = 1.0 + 0.1 * jax.random.normal(k[1], (channels,), jnp.float32)
    bn_beta = 0.1 * jax.random.normal(k[2], (channels,), jnp.float32)
    bn_mean = 0.05 * jax.random.normal(k[3], (channels,), jnp.float32)
    bn_var = jnp.abs(1.0 + 0.1 * jax.random.normal(k[4], (channels,), jnp.float32))
    shrink_w = 0.2 * jax.random.normal(k[5], (C_out, channels, 1), jnp.float32)
    shrink_b = 0.05 * jax.random.normal(k[6], (C_out,), jnp.float32)

    out = temporal_model_base_forward(
        x, bn_gamma, bn_beta, bn_mean, bn_var, shrink_w, shrink_b,
        num_joints_out=num_joints_out)
    out = jax.block_until_ready(out)

    ref = _reference_forward(x, bn_gamma, bn_beta, bn_mean, bn_var,
                             shrink_w, shrink_b, num_joints_out)
    assert out.shape == (B, T, num_joints_out, 3), out.shape
    # Output is bf16 (mem-bound kernel: halves output HBM bytes); compare in f32 with
    # a tolerance that covers bf16 quantization (~0.4% relative).
    assert jnp.allclose(out.astype(jnp.float32), ref, atol=2e-2, rtol=2e-2), \
        "mismatch vs reference"
    print("KERNEL_OK")
</pallas_src>

<mosaic_0001>
module attributes {stable_mosaic.version = 11 : i64} {
  func.func @_temporal_base_kernel(%arg0: i32, %arg1: memref<16x8xf32, #tpu.memory_space<vmem>>, %arg2: memref<1x8xf32, #tpu.memory_space<vmem>>, %arg3: memref<1x8xf32, #tpu.memory_space<vmem>>, %arg4: memref<8x12xbf16, #tpu.memory_space<vmem>>, %arg5: memref<1x12xf32, #tpu.memory_space<vmem>>, %arg6: memref<16x12xbf16, #tpu.memory_space<vmem>>) attributes {dimension_semantics = [#tpu.dimension_semantics<parallel>], iteration_bounds = array<i64: 2>, scalar_prefetch = 0 : i64, scratch_operands = 0 : i64, tpu.core_type = #tpu.core_type<tc>, window_params = [{transform_indices = @transform_0, window_bounds = array<i64: 16, 8>}, {pipeline_mode = #tpu.pipeline_mode<synchronous>, transform_indices = @transform_1, window_bounds = array<i64: 1, 8>}, {pipeline_mode = #tpu.pipeline_mode<synchronous>, transform_indices = @transform_2, window_bounds = array<i64: 1, 8>}, {pipeline_mode = #tpu.pipeline_mode<synchronous>, transform_indices = @transform_3, window_bounds = array<i64: 8, 12>}, {pipeline_mode = #tpu.pipeline_mode<synchronous>, transform_indices = @transform_4, window_bounds = array<i64: 1, 12>}, {transform_indices = @transform_5, window_bounds = array<i64: 16, 12>}]} {
    %c0 = arith.constant 0 : index
    %c0_0 = arith.constant 0 : index
    %0 = vector.load %arg1[%c0, %c0_0] : memref<16x8xf32, #tpu.memory_space<vmem>>, vector<16x8xf32>
    %c0_1 = arith.constant 0 : index
    %c0_2 = arith.constant 0 : index
    %1 = vector.load %arg2[%c0_1, %c0_2] : memref<1x8xf32, #tpu.memory_space<vmem>>, vector<1x8xf32>
    %2 = vector.broadcast %1 : vector<1x8xf32> to vector<16x8xf32>
    %3 = arith.mulf %0, %2 : vector<16x8xf32>
    %c0_3 = arith.constant 0 : index
    %c0_4 = arith.constant 0 : index
    %4 = vector.load %arg3[%c0_3, %c0_4] : memref<1x8xf32, #tpu.memory_space<vmem>>, vector<1x8xf32>
    %5 = vector.broadcast %4 : vector<1x8xf32> to vector<16x8xf32>
    %6 = arith.addf %3, %5 : vector<16x8xf32>
    %cst = arith.constant 0.000000e+00 : f32
    %7 = vector.broadcast %cst : f32 to vector<16x8xf32>
    %8 = arith.maximumf %6, %7 : vector<16x8xf32>
    %9 = arith.truncf %8 : vector<16x8xf32> to vector<16x8xbf16>
    %c0_5 = arith.constant 0 : index
    %c0_6 = arith.constant 0 : index
    %10 = vector.load %arg4[%c0_5, %c0_6] : memref<8x12xbf16, #tpu.memory_space<vmem>>, vector<8x12xbf16>
    %cst_7 = arith.constant dense<0.000000e+00> : vector<16x12xf32>
    %11 = tpu.matmul %9, %10, %cst_7 {dimension_numbers = #tpu.dot_dimension_numbers<[1], [0], [0], [1], [0, 0, 1, 1], [], []>} : vector<16x8xbf16>, vector<8x12xbf16>, vector<16x12xf32> -> vector<16x12xf32>
    %c0_8 = arith.constant 0 : index
    %c0_9 = arith.constant 0 : index
    %12 = vector.load %arg5[%c0_8, %c0_9] : memref<1x12xf32, #tpu.memory_space<vmem>>, vector<1x12xf32>
    %13 = vector.broadcast %12 : vector<1x12xf32> to vector<16x12xf32>
    %14 = arith.addf %11, %13 : vector<16x12xf32>
    %15 = arith.truncf %14 : vector<16x12xf32> to vector<16x12xbf16>
    %c0_10 = arith.constant 0 : index
    %c0_11 = arith.constant 0 : index
    %16 = vector.load %arg6[%c0_10, %c0_11] : memref<16x12xbf16, #tpu.memory_space<vmem>>, vector<16x12xbf16>
    tpu.vector_store %arg6[%c0_10, %c0_11], %15 {strides = array<i32>} : memref<16x12xbf16, #tpu.memory_space<vmem>>, vector<16x12xbf16>,
    return
  }
  func.func @transform_0(%arg0: i32) -> (i32, i32) {
    %c0_i32 = arith.constant 0 : i32
    %c0_i32_0 = arith.constant 0 : i32
    return %arg0, %c0_i32 : i32, i32
  }
  func.func @transform_1(%arg0: i32) -> (i32, i32) {
    %c0_i32 = arith.constant 0 : i32
    %c0_i32_0 = arith.constant 0 : i32
    %c0_i32_1 = arith.constant 0 : i32
    return %c0_i32, %c0_i32_0 : i32, i32
  }
  func.func @transform_2(%arg0: i32) -> (i32, i32) {
    %c0_i32 = arith.constant 0 : i32
    %c0_i32_0 = arith.constant 0 : i32
    %c0_i32_1 = arith.constant 0 : i32
    return %c0_i32, %c0_i32_0 : i32, i32
  }
  func.func @transform_3(%arg0: i32) -> (i32, i32) {
    %c0_i32 = arith.constant 0 : i32
    %c0_i32_0 = arith.constant 0 : i32
    %c0_i32_1 = arith.constant 0 : i32
    return %c0_i32, %c0_i32_0 : i32, i32
  }
  func.func @transform_4(%arg0: i32) -> (i32, i32) {
    %c0_i32 = arith.constant 0 : i32
    %c0_i32_0 = arith.constant 0 : i32
    %c0_i32_1 = arith.constant 0 : i32
    return %c0_i32, %c0_i32_0 : i32, i32
  }
  func.func @transform_5(%arg0: i32) -> (i32, i32) {
    %c0_i32 = arith.constant 0 : i32
    %c0_i32_0 = arith.constant 0 : i32
    return %arg0, %c0_i32 : i32, i32
  }
}

</mosaic_0001>

<llo_original>
// kernel: temporal_model_base_forward.1
$region0: #{temporal_model_base_forward.1}
  #allocation0 [shape = 'u32[]', space=smem, size = 0x4, offset = 0x4, fixed_abs, tag = 'smem constant byte address 0x4 - core index']
  #allocation1 [shape = 'u32[144,128]{1,0:T(1,128)}', space=vmem, size = 0x12000, scoped, tag = 'internal scratch']
  %s0 = inlined_call_operand.vmem [shape: f32[32,8], index: 0, kind: input, shape index: {}]
  %s1 = inlined_call_operand.vmem [shape: f32[1,8], index: 1, kind: input, shape index: {}]
  %s2 = inlined_call_operand.vmem [shape: f32[1,8], index: 2, kind: input, shape index: {}]
  %s3 = inlined_call_operand.vmem [shape: bf16[8,12], index: 3, kind: input, shape index: {}]
  %s4 = inlined_call_operand.vmem [shape: f32[1,12], index: 4, kind: input, shape index: {}]
  %s5 = inlined_call_operand.vmem [shape: bf16[32,12], index: 5, kind: output, shape index: {}]
  %s6 = sld [smem:[#allocation0]]
  $region53: #{temporal_model_base_forward.1} parent=0
    _
  %s8 = ssub.s32 1, %s6
  %s9 = scalar_select 0, %s8, %s6
  loop: start=0, step=1, limit=4
  $region2: #{temporal_model_base_forward.1} parent=0 // loop_pre_header
    _
  $region3: #{temporal_model_base_forward.1} parent=0 // loop_header
    %s11 = sphi 0, %s15
    %p12 = scmp.ge.s32.totalorder %s11, 4
    %s21 = sphi 0, %s23
    %s24 = sphi 0, %s21
    %s25 = sphi 0, %s24
    %s41 = sphi 0, %s25
    %s45 = sphi 0, %s45
    %s47 = sphi 0, %s45
    %s48 = sphi 0, %s47
    %s62 = sphi 0, %s48
    %s66 = sphi 0, %s66
    %s68 = sphi 0, %s66
    %s69 = sphi 0, %s68
    %s83 = sphi 0, %s69
    %s87 = sphi 0, %s87
    %s89 = sphi 0, %s87
    %s90 = sphi 0, %s89
    %s104 = sphi 0, %s90
    %s108 = sphi 0, %s108
    %s110 = sphi 0, %s108
    %s111 = sphi 0, %s110
    %s125 = sphi 0, %s111
    %s131 = sphi 0, %s133
    %s134 = sphi 0, %s131
    %s135 = sphi 0, %s134
    %s151 = sphi 0, %s135
  $region4: #{temporal_model_base_forward.1} parent=0 // loop_header_branch
    %14 = sbr.rel (%p12) target = $region8
  $region5: #{temporal_model_base_forward.1} parent=0 // loop_body
    %s16 = ssub.s32 %s11, 1
    %s17 = ssub.s32 %s11, 2
    %s18 = sadd.s32 %s11, 1
    %s19 = ssub.s32 %s11, %s18
    %p20 = scmp.eq.s32.totalorder %s19, 0
    %s22 = sadd.s32 %s21, 1
    %s23 = scalar_select %p20, %s21, %s22
    %p26 = pneg %p20
    %p27 = scmp.eq.s32.totalorder %s11, 1
    %p28 = por %p26, %p27
    %p29 = scmp.ne.s32.totalorder %s21, %s24
    %p30 = scmp.eq.s32.totalorder %s11, 0
    %p31 = por %p29, %p30
    %p32 = scmp.ne.s32.totalorder %s21, %s24
    %p33 = scmp.eq.s32.totalorder %s16, 1
    %p34 = por %p32, %p33
    %p35 = scmp.ne.s32.totalorder %s24, %s25
    %p36 = scmp.eq.s32.totalorder %s16, 0
    %p37 = por %p35, %p36
    %p38 = scmp.ne.s32.totalorder %s24, %s25
    %p39 = scmp.eq.s32.totalorder %s17, 1
    %p40 = por %p38, %p39
    %p42 = scmp.ne.s32.totalorder %s25, %s41
    %p43 = scmp.eq.s32.totalorder %s17, 0
    %p44 = por %p42, %p43
    %s46 = sadd.s32 %s45, 1
    %p49 = scmp.eq.s32.totalorder %s11, 1
    %p50 = scmp.ne.s32.totalorder %s45, %s47
    %p51 = scmp.eq.s32.totalorder %s11, 0
    %p52 = por %p50, %p51
    %p53 = scmp.ne.s32.totalorder %s45, %s47
    %p54 = scmp.eq.s32.totalorder %s16, 1
    %p55 = por %p53, %p54
    %p56 = scmp.ne.s32.totalorder %s47, %s48
    %p57 = scmp.eq.s32.totalorder %s16, 0
    %p58 = por %p56, %p57
    %p59 = scmp.ne.s32.totalorder %s47, %s48
    %p60 = scmp.eq.s32.totalorder %s17, 1
    %p61 = por %p59, %p60
    %p63 = scmp.ne.s32.totalorder %s48, %s62
    %p64 = scmp.eq.s32.totalorder %s17, 0
    %p65 = por %p63, %p64
    %s67 = sadd.s32 %s66, 1
    %p70 = scmp.eq.s32.totalorder %s11, 1
    %p71 = scmp.ne.s32.totalorder %s66, %s68
    %p72 = scmp.eq.s32.totalorder %s11, 0
    %p73 = por %p71, %p72
    %p74 = scmp.ne.s32.totalorder %s66, %s68
    %p75 = scmp.eq.s32.totalorder %s16, 1
    %p76 = por %p74, %p75
    %p77 = scmp.ne.s32.totalorder %s68, %s69
    %p78 = scmp.eq.s32.totalorder %s16, 0
    %p79 = por %p77, %p78
    %p80 = scmp.ne.s32.totalorder %s68, %s69
    %p81 = scmp.eq.s32.totalorder %s17, 1
    %p82 = por %p80, %p81
    %p84 = scmp.ne.s32.totalorder %s69, %s83
    %p85 = scmp.eq.s32.totalorder %s17, 0
    %p86 = por %p84, %p85
    %s88 = sadd.s32 %s87, 1
    %p91 = scmp.eq.s32.totalorder %s11, 1
    %p92 = scmp.ne.s32.totalorder %s87, %s89
    %p93 = scmp.eq.s32.totalorder %s11, 0
    %p94 = por %p92, %p93
    %p95 = scmp.ne.s32.totalorder %s87, %s89
    %p96 = scmp.eq.s32.totalorder %s16, 1
    %p97 = por %p95, %p96
    %p98 = scmp.ne.s32.totalorder %s89, %s90
    %p99 = scmp.eq.s32.totalorder %s16, 0
    %p100 = por %p98, %p99
    %p101 = scmp.ne.s32.totalorder %s89, %s90
    %p102 = scmp.eq.s32.totalorder %s17, 1
    %p103 = por %p101, %p102
    %p105 = scmp.ne.s32.totalorder %s90, %s104
    %p106 = scmp.eq.s32.totalorder %s17, 0
    %p107 = por %p105, %p106
    %s109 = sadd.s32 %s108, 1
    %p112 = scmp.eq.s32.totalorder %s11, 1
    %p113 = scmp.ne.s32.totalorder %s108, %s110
    %p114 = scmp.eq.s32.totalorder %s11, 0
    %p115 = por %p113, %p114
    %p116 = scmp.ne.s32.totalorder %s108, %s110
    %p117 = scmp.eq.s32.totalorder %s16, 1
    %p118 = por %p116, %p117
    %p119 = scmp.ne.s32.totalorder %s110, %s111
    %p120 = scmp.eq.s32.totalorder %s16, 0
    %p121 = por %p119, %p120
    %p122 = scmp.ne.s32.totalorder %s110, %s111
    %p123 = scmp.eq.s32.totalorder %s17, 1
    %p124 = por %p122, %p123
    %p126 = scmp.ne.s32.totalorder %s111, %s125
    %p127 = scmp.eq.s32.totalorder %s17, 0
    %p128 = por %p126, %p127
    %s129 = ssub.s32 %s11, %s18
    %p130 = scmp.eq.s32.totalorder %s129, 0
    %s132 = sadd.s32 %s131, 1
    %s133 = scalar_select %p130, %s131, %s132
    %p136 = pneg %p130
    %p137 = scmp.eq.s32.totalorder %s11, 1
    %p138 = por %p136, %p137
    %p139 = scmp.ne.s32.totalorder %s131, %s134
    %p140 = scmp.eq.s32.totalorder %s11, 0
    %p141 = por %p139, %p140
    %p142 = scmp.ne.s32.totalorder %s131, %s134
    %p143 = scmp.eq.s32.totalorder %s16, 1
    %p144 = por %p142, %p143
    %p145 = scmp.ne.s32.totalorder %s134, %s135
    %p146 = scmp.eq.s32.totalorder %s16, 0
    %p147 = por %p145, %p146
    %p148 = scmp.ne.s32.totalorder %s134, %s135
    %p149 = scmp.eq.s32.totalorder %s17, 1
    %p150 = por %p148, %p149
    %p152 = scmp.ne.s32.totalorder %s135, %s151
    %p153 = scmp.eq.s32.totalorder %s17, 0
    %p154 = por %p152, %p153
    %p155 = scmp.le.s32.totalorder 1, %s11
    %p156 = scmp.lt.s32.totalorder %s11, 3
    %p157 = pnand %p155, %p156
    %p158 = pneg %p157
    // Predicated region
    $region9: #{temporal_model_base_forward.1} parent=5 // pred_check
      _
    $region10: #{temporal_model_base_forward.1} parent=5 // pred_check_branch
      %160 = sbr.rel (%p157) target = $region12
    $region11: #{temporal_model_base_forward.1} parent=5 // pred_region
      %s161 = ssub.s32 %s11, 1
      // Predicated region
      $region13: #{temporal_model_base_forward.1} parent=11 // pred_check
        %p162 = pneg %p58
      $region14: #{temporal_model_base_forward.1} parent=11 // pred_check_branch
        %164 = sbr.rel (%p162) target = $region16
      $region15: #{temporal_model_base_forward.1} parent=11 // pred_region
        _
      $region16: #{temporal_model_base_forward.1} parent=11 // pred_fallthru
        _
      // Predicated region
      $region17: #{temporal_model_base_forward.1} parent=11 // pred_check
        %p165 = pneg %p79
      $region18: #{temporal_model_base_forward.1} parent=11 // pred_check_branch
        %167 = sbr.rel (%p165) target = $region20
      $region19: #{temporal_model_base_forward.1} parent=11 // pred_region
        _
      $region20: #{temporal_model_base_forward.1} parent=11 // pred_fallthru
        _
      // Predicated region
      $region21: #{temporal_model_base_forward.1} parent=11 // pred_check
        %p168 = pneg %p100
      $region22: #{temporal_model_base_forward.1} parent=11 // pred_check_branch
        %170 = sbr.rel (%p168) target = $region24
      $region23: #{temporal_model_base_forward.1} parent=11 // pred_region
        _
      $region24: #{temporal_model_base_forward.1} parent=11 // pred_fallthru
        _
      // Predicated region
      $region25: #{temporal_model_base_forward.1} parent=11 // pred_check
        %p171 = pneg %p121
      $region26: #{temporal_model_base_forward.1} parent=11 // pred_check_branch
        %173 = sbr.rel (%p171) target = $region28
      $region27: #{temporal_model_base_forward.1} parent=11 // pred_region
        _
      $region28: #{temporal_model_base_forward.1} parent=11 // pred_fallthru
        _
    $region12: #{temporal_model_base_forward.1} parent=5 // pred_fallthru
      _
    %p174 = scmp.lt.s32.totalorder %s11, 2
    // Predicated region
    $region29: #{temporal_model_base_forward.1} parent=5 // pred_check
      %p175 = pneg %p174
    $region30: #{temporal_model_base_forward.1} parent=5 // pred_check_branch
      %177 = sbr.rel (%p175) target = $region32
    $region31: #{temporal_model_base_forward.1} parent=5 // pred_region
      // Predicated region
      $region33: #{temporal_model_base_forward.1} parent=31 // pred_check
        %p178 = pneg %p31
      $region34: #{temporal_model_base_forward.1} parent=31 // pred_check_branch
        %180 = sbr.rel (%p178) target = $region36
      $region35: #{temporal_model_base_forward.1} parent=31 // pred_region
        %s181 = smul.u32 2, %s11
        %p182 = scmp.lt.s32.totalorder %s181, 3
        %s183 = scalar_select %p182, %s181, 3
        %s184 = smul.addr %s183, 8
        %s185 = scalar_lea.vmem %s0, %s184
        %s186 = smul.u32 2, %s11
      $region36: #{temporal_model_base_forward.1} parent=31 // pred_fallthru
        _
    $region32: #{temporal_model_base_forward.1} parent=5 // pred_fallthru
      _
    %p187 = scmp.le.s32.totalorder 1, %s11
    %p188 = scmp.lt.s32.totalorder %s11, 3
    %p189 = pnand %p187, %p188
    %p190 = pneg %p189
    // Predicated region
    $region37: #{temporal_model_base_forward.1} parent=5 // pred_check
      _
    $region38: #{temporal_model_base_forward.1} parent=5 // pred_check_branch
      %192 = sbr.rel (%p189) target = $region40
    $region39: #{temporal_model_base_forward.1} parent=5 // pred_region
      %s193 = ssub.s32 %s11, 1
      %s194 = smul.u32 2, %s16
      %p195 = scmp.lt.s32.totalorder %s194, 3
      %s196 = scalar_select %p195, %s194, 3
      %s197 = smul.addr %s196, 8
      %s198 = scalar_lea.vmem %s0, %s197
      %p199 = pneg %p37
      %p200 = pneg %p34
      %p201 = pneg %p58
      %p202 = pneg %p55
      %p203 = pneg %p79
      %p204 = pneg %p76
      %p205 = pneg %p100
      %p206 = pneg %p97
      %p207 = pneg %p121
      %p208 = pneg %p118
      %p209 = pneg %p147
      %p210 = pneg %p144
      %s211 = smul.u32 2, %s16
      %p212 = scmp.lt.s32.totalorder %s211, 3
      %s213 = scalar_select %p212, %s211, 3
      %s214 = smul.addr %s213, 4
      %s215 = scalar_lea.vmem %s5, %s214
      %s216 = smul.u32 2, %s16
      %p217 = scmp.lt.s32.totalorder %s216, 3
      %s218 = scalar_select %p217, %s216, 3
      %s219 = smul.addr %s218, 8
      %s220 = scalar_lea.vmem %s0, %s219
      %s221 = smul.u32 2, %s16
      %s222 = smul.u32 2, %s16
      %p223 = scmp.lt.s32.totalorder %s222, 3
      %s224 = scalar_select %p223, %s222, 3
      %s225 = smul.addr %s224, 4
      %s226 = scalar_lea.vmem %s5, %s225
      %s227 = smul.u32 2, %s16
      %v229 = vld [vmem:[%s220] sm:$0xff]
      %v230 = vld [vmem:[%s220 + $0x8] sm:$0xff]
      %v231 = vld [vmem:[%s1] sm:$0x1]
      %v233 = vlaneseq
      %v234 = vshrl.u32 %v233, 7
      %v235 = vsub.s32 0, %v234
      %v236 = vrot.slane %v231, %v235
      %v238 = vmul.f32 %v229, %v236
      %v239 = vmul.f32 %v230, %v236
      %v240 = vld [vmem:[%s2] sm:$0x1]
      %v242 = vlaneseq
      %v243 = vshrl.u32 %v242, 7
      %v244 = vsub.s32 0, %v243
      %v245 = vrot.slane %v240, %v244
      %v247 = vadd.f32 %v238, %v245
      %v248 = vadd.f32 %v239, %v245
      %v249 = vmax.f32 %v247, 0.0
      %v250 = vmax.f32 %v248, 0.0
      %v251 = vpack.c.bf16 %v250, %v249
      %v252 = vld [vmem:[%s3] sm:$0xf]
      %v253 = vld [vmem:[%s4] sm:$0x1]
      %v255 = vlaneseq
      %v256 = vshrl.u32 %v255, 7
      %v257 = vsub.s32 0, %v256
      %v258 = vrot.slane %v253, %v257
      %vm260 = vcmask 64512
      %v262 = vsel %vm260, %v251, 0
      %vm264 = vcmask 1043456
      %v266 = vsel %vm264, %v252, 0
      %268 = vmatprep.subr.bf16.mxu0 0
      %269 = vmatpush1.bf16.msra.mxu0 %v266
      %270 = vmatprep.subr.bf16.mxu0 0
      %271 = vmatpush1.bf16.msra.mxu0 0
      %272 = vmatprep.subr.bf16.mxu0 0
      %273 = vmatpush1.bf16.msra.mxu0 0
      %274 = vmatprep.subr.bf16.mxu0 0
      %275 = vmatpush1.bf16.msra.mxu0 0
      %276 = vmatprep.subr.bf16.mxu0 0
      %277 = vmatpush1.bf16.msra.mxu0 0
      %278 = vmatprep.subr.bf16.mxu0 0
      %279 = vmatpush1.bf16.msra.mxu0 0
      %280 = vmatprep.subr.bf16.mxu0 0
      %281 = vmatpush1.bf16.msra.mxu0 0
      %282 = vmatprep.subr.bf16.mxu0 0
      %283 = vmatpush1.bf16.msra.mxu0 0
      %284 = vmatprep.subr.bf16.mxu0 0
      %285 = vmatpush1.bf16.msra.mxu0 0
      %286 = vmatprep.subr.bf16.mxu0 0
      %287 = vmatpush1.bf16.msra.mxu0 0
      %288 = vmatprep.subr.bf16.mxu0 0
      %289 = vmatpush1.bf16.msra.mxu0 0
      %290 = vmatprep.subr.bf16.mxu0 0
      %291 = vmatpush1.bf16.msra.mxu0 0
      %292 = vmatprep.subr.bf16.mxu0 0
      %293 = vmatpush1.bf16.msra.mxu0 0
      %294 = vmatprep.subr.bf16.mxu0 0
      %295 = vmatpush1.bf16.msra.mxu0 0
      %296 = vmatprep.subr.bf16.mxu0 0
      %297 = vmatpush1.bf16.msra.mxu0 0
      %298 = vmatprep.subr.bf16.mxu0 0
      %299 = vmatpush1.bf16.msra.mxu0 0
      %300 = vmatprep.mubr.bf16.mxu0 0
      %301 = vmatmul.mubr.bf16.gmra.mrb[0].mxu0 %v262
      %v302 = vpop.f32.mrb[0].mxu0
      %v303 = vadd.f32 %v258, %v302
      %v304 = vpop.f32.mrb[0].mxu0
      %v305 = vpop.f32.mrb[0].mxu0
      %v306 = vadd.f32 %v258, %v305
      %v307 = vpop.f32.mrb[0].mxu0
      %308 = vdwg.mxu0
      %v309 = vpack.c.bf16 %v306, %v303
      %v311 = vunpack.c.l.b16 %v309
      %v312 = vunpack.c.h.b16 %v309
      %v313 = vpack.c.b16 %v311, %v311
      %v314 = vpack.c.b16 %v312, %v312
      %vm317 = vcmask 93184
      %318 = vst.msk [vmem:[%s226] sm:$0xf] %vm317, %v313
      %319 = vst.msk [vmem:[%s226 + $0x4] sm:$0xf] %vm317, %v314
      %s320 = smul.u32 2, %s16
      %p321 = scmp.lt.s32.totalorder %s320, 3
      %s322 = scalar_select %p321, %s320, 3
      %s323 = smul.addr %s322, 4
      %s324 = scalar_lea.vmem %s5, %s323
      // Predicated region
      $region41: #{temporal_model_base_forward.1} parent=39 // pred_check
        %p325 = pneg %p144
      $region42: #{temporal_model_base_forward.1} parent=39 // pred_check_branch
        %327 = sbr.rel (%p325) target = $region44
      $region43: #{temporal_model_base_forward.1} parent=39 // pred_region
        %s328 = smul.u32 2, %s16
      $region44: #{temporal_model_base_forward.1} parent=39 // pred_fallthru
        _
    $region40: #{temporal_model_base_forward.1} parent=5 // pred_fallthru
      _
    %p329 = scmp.le.s32.totalorder 2, %s11
    // Predicated region
    $region45: #{temporal_model_base_forward.1} parent=5 // pred_check
      %p330 = pneg %p329
    $region46: #{temporal_model_base_forward.1} parent=5 // pred_check_branch
      %332 = sbr.rel (%p330) target = $region48
    $region47: #{temporal_model_base_forward.1} parent=5 // pred_region
      %s333 = ssub.s32 %s11, 2
      // Predicated region
      $region49: #{temporal_model_base_forward.1} parent=47 // pred_check
        %p334 = pneg %p150
      $region50: #{temporal_model_base_forward.1} parent=47 // pred_check_branch
        %336 = sbr.rel (%p334) target = $region52
      $region51: #{temporal_model_base_forward.1} parent=47 // pred_region
        %s337 = smul.u32 2, %s17
        %p338 = scmp.lt.s32.totalorder %s337, 3
        %s339 = scalar_select %p338, %s337, 3
        %s340 = smul.addr %s339, 4
        %s341 = scalar_lea.vmem %s5, %s340
      $region52: #{temporal_model_base_forward.1} parent=47 // pred_fallthru
        _
    $region48: #{temporal_model_base_forward.1} parent=5 // pred_fallthru
      _
  $region6: #{temporal_model_base_forward.1} parent=0 // loop_footer
    %s15 = sadd.s32 1, %s11
  $region7: #{temporal_model_base_forward.1} parent=0 // loop_footer_branch
    %10 = sbr.rel target = $region3
  $region8: #{temporal_model_base_forward.1} parent=0 // loop_exit
    _

</llo_original>
